<compile_context>
chip_gen: v6e
topology: v6e:2x2x1
jax: 0.10.0
libtpu: 0.0.40
codegen_flags: <defaults>
</compile_context>

<pallas_src>
import math

import jax
import jax.numpy as jnp
from jax.experimental import pallas as pl
from jax.experimental.pallas import tpu as pltpu


# ------------------------------ Pallas kernel --------------------------------
def make_self_attention12_kernel(num_heads, head_size, block_b, seq_len, hidden_size):
    rows = block_b * seq_len
    H = hidden_size

    def kernel(hs_ref, mask_ref, wqkv_ref, bqkv_ref, out_ref):
        # (block_b, S, H) bf16 -> (rows, H); merging leading dims is free.
        xb = hs_ref[...].reshape(rows, H)

        # Fused QKV projection: one wide bf16 MXU matmul, f32 accumulation.
        qkv = jnp.dot(xb, wqkv_ref[...], preferred_element_type=jnp.float32)
        qkv = qkv + bqkv_ref[...]                            # (rows, 3H) f32

        # 1/sqrt(dh) is already folded into Wq/bq and Wk/bk in the wrapper, so
        # the variant-12 transform is just k + v.  Cast to bf16 immediately so
        # the f32 projections are not kept live past this point.
        v32 = qkv[:, 2 * H:]
        q = qkv[:, :H].astype(jnp.bfloat16)
        kmod = (qkv[:, H:2 * H] + v32).astype(jnp.bfloat16)
        v = v32.astype(jnp.bfloat16)

        # Query-axis mask (== masked_fill(mask[:,None,:,None]==0, -1e4)):
        # a fully masked query row becomes a uniform -1e4 row -> uniform probs,
        # which an additive key-axis bias would NOT reproduce.  Computed once.
        keep = mask_ref[...] != 0.0                          # (block_b, S, 1)

        for h in range(num_heads):                           # static unroll, NH small
            sl = slice(h * head_size, (h + 1) * head_size)
            qh = q[:, sl].reshape(block_b, seq_len, head_size)
            kh = kmod[:, sl].reshape(block_b, seq_len, head_size)
            vh = v[:, sl].reshape(block_b, seq_len, head_size)

            # scores = q . kmod^T  (batched over the batch block, f32 acc)
            scores = jnp.einsum('bqd,bkd->bqk', qh, kh,
                                preferred_element_type=jnp.float32)
            scores = jnp.where(keep, scores, -10000.0)

            # stable softmax in f32; the reciprocal rides the EUP slot.
            m = jnp.max(scores, axis=-1, keepdims=True)
            e = jnp.exp(scores - m)
            inv = pl.reciprocal(jnp.sum(e, axis=-1, keepdims=True), approx=True)
            probs = (e * inv).astype(jnp.bfloat16)

            ctx = jnp.einsum('bqk,bkd->bqd', probs, vh,
                             preferred_element_type=jnp.float32)
            # write this head straight into its output lane slice (no concat,
            # no extra (block_b, S, H) temporary).
            out_ref[:, :, sl] = ctx.astype(out_ref.dtype)

    return kernel


# ------------------------------ tuning helpers --------------------------------
def _vmem_limit_bytes():
    """~75% of physical VMEM: ~48 MiB on v7x (64 MiB/TC), ~96 MiB on v5e/v6e."""
    try:
        cap = int(pltpu.get_tpu_info().vmem_capacity_bytes)
    except Exception:
        cap = 64 * 1024 * 1024          # conservative fallback (v7x per-TC size)
    return int(min(cap * 3 // 4, 100 * 1024 * 1024))


def _auto_block_b(B, S, H, vmem_limit):
    """Largest block_b that (a) divides B, (b) keeps >= 2 grid steps when B > 1
    (v7x shards the 'parallel' axis over 2 TensorCores), and (c) keeps the
    per-step working set well inside the VMEM budget."""
    def block_bytes(bb):
        rows = bb * S
        proj = rows * 3 * H * (4 + 2)       # f32 qkv + bf16 q/kmod/v
        attn = bb * S * S * 4 * 2           # scores + exp for one head
        io = bb * S * H * (2 + 4) * 2       # double-buffered bf16 in + f32 out
        return proj + attn + io

    bb = B if B == 1 else B // 2
    while bb > 1 and (B % bb != 0 or block_bytes(bb) > 0.4 * vmem_limit):
        bb -= 1
    return max(bb, 1)


# --------------------------------- wrapper ------------------------------------
def bert_self_attention12(hidden, attention_mask, params, *, num_heads,
                          block_b=None, out_dtype=jnp.float32):
    """hidden: (B, S, H); attention_mask: (B, S) (1.0 keep / 0.0 mask) or None.
    params: wq/wk/wv (H, H), bq/bk/bv (1, H). Returns context layer (B, S, H)."""
    B, S, H = hidden.shape
    assert H % num_heads == 0, "hidden size must be a multiple of num heads"
    head_size = H // num_heads
    inv_dh = 1.0 / math.sqrt(head_size)

    vmem_limit = _vmem_limit_bytes()
    if block_b is None:
        block_b = _auto_block_b(B, S, H, vmem_limit)
    assert B % block_b == 0, "batch must be divisible by block_b"

    if attention_mask is None:
        attention_mask = jnp.ones((B, S), jnp.float32)
    mask3 = attention_mask.reshape(B, S, 1).astype(jnp.float32)

    # Fold the 1/sqrt(dh) score scale into the query & key weights/biases, fuse
    # Q|K|V into a single (H, 3H) projection, and store the weights in bf16 for
    # the MXU (biases stay f32 for the f32 accumulate + bias add).
    wqkv = jnp.concatenate(
        [params["wq"] * inv_dh, params["wk"] * inv_dh, params["wv"]],
        axis=1).astype(jnp.bfloat16)                          # (H, 3H)
    bqkv = jnp.concatenate(
        [params["bq"] * inv_dh, params["bk"] * inv_dh, params["bv"]],
        axis=1).astype(jnp.float32)                           # (1, 3H)

    kernel = make_self_attention12_kernel(num_heads, head_size, block_b, S, H)

    def const_spec(shape):
        # Constant-index weights/biases: single-buffered (index never changes).
        return pl.BlockSpec(shape, lambda b: (0,) * len(shape),
                            pipeline_mode=pl.Buffered(1))

    in_specs = [
        pl.BlockSpec((block_b, S, H), lambda b: (b, 0, 0)),   # hidden (bf16)
        pl.BlockSpec((block_b, S, 1), lambda b: (b, 0, 0)),   # attention mask
        const_spec((H, 3 * H)),                               # fused QKV weight
        const_spec((1, 3 * H)),                               # fused QKV bias
    ]

    return pl.pallas_call(
        kernel,
        out_shape=jax.ShapeDtypeStruct((B, S, H), out_dtype),
        grid_spec=pltpu.PrefetchScalarGridSpec(
            num_scalar_prefetch=0,
            grid=(B // block_b,),
            in_specs=in_specs,
            out_specs=pl.BlockSpec((block_b, S, H), lambda b: (b, 0, 0)),
        ),
        compiler_params=pltpu.CompilerParams(
            dimension_semantics=("parallel",),
            vmem_limit_bytes=vmem_limit,
        ),
    )(hidden.astype(jnp.bfloat16), mask3, wqkv, bqkv)


# ---------------------------- pure-JAX reference ------------------------------
def reference_self_attention12(hidden, attention_mask, params, *, num_heads):
    B, S, H = hidden.shape
    head_size = H // num_heads
    dh = math.sqrt(head_size)
    lin = lambda x, w, b: x @ w + b

    q = lin(hidden, params["wq"], params["bq"])
    k = lin(hidden, params["wk"], params["bk"])
    v = lin(hidden, params["wv"], params["bv"])

    def heads(t):
        return t.reshape(B, S, num_heads, head_size).transpose(0, 2, 1, 3)

    qh, kh, vh = heads(q), heads(k), heads(v)
    kh = kh / dh + vh                                    # variant 12
    scores = jnp.einsum("bhqd,bhkd->bhqk", qh, kh) / dh
    if attention_mask is not None:
        scores = jnp.where(attention_mask[:, None, :, None] == 0, -10000.0, scores)
    probs = jax.nn.softmax(scores, axis=-1)              # dropout = identity
    ctx = jnp.einsum("bhqk,bhkd->bhqd", probs, vh)
    return ctx.transpose(0, 2, 1, 3).reshape(B, S, H)


# ----------------------------------- main -------------------------------------
if __name__ == "__main__":
    B, S, H, NH = 2, 8, 32, 4        # batch, seq, hidden_size, num_attention_heads

    key = jax.random.PRNGKey(0)
    keys = jax.random.split(key, 8)
    std = 0.02
    w = lambda k, shape: (std * jax.random.normal(k, shape)).astype(jnp.float32)

    params = {
        "wq": w(keys[1], (H, H)), "bq": w(keys[2], (1, H)),
        "wk": w(keys[3], (H, H)), "bk": w(keys[4], (1, H)),
        "wv": w(keys[5], (H, H)), "bv": w(keys[6], (1, H)),
    }

    hidden = jax.random.normal(keys[0], (B, S, H), jnp.float32)
    # mask out the last position of the second sequence to exercise the mask
    mask2d = jnp.ones((B, S), jnp.float32).at[1, S - 1].set(0.0)

    ref = reference_self_attention12(hidden, mask2d, params, num_heads=NH)

    # auto block_b -> 1 here -> grid=(2,): >= 2 parallel steps (v7x 2-TC safe)
    out = jax.block_until_ready(
        bert_self_attention12(hidden, mask2d, params, num_heads=NH))
    assert out.shape == (B, S, H) and out.dtype == jnp.float32
    err = float(jnp.max(jnp.abs(out - ref)))
    assert err < 1e-2, f"mismatch (auto block_b): max abs err {err}"

    # explicit block_b=2 folds the whole batch into the projection row axis
    out2 = jax.block_until_ready(
        bert_self_attention12(hidden, mask2d, params, num_heads=NH, block_b=2))
    err2 = float(jnp.max(jnp.abs(out2 - ref)))
    assert err2 < 1e-2, f"mismatch (block_b=2): max abs err {err2}"

    # bf16 output path (halves writeback DMA when the consumer tolerates it)
    out3 = jax.block_until_ready(
        bert_self_attention12(hidden, mask2d, params, num_heads=NH,
                              out_dtype=jnp.bfloat16))
    err3 = float(jnp.max(jnp.abs(out3.astype(jnp.float32) - ref)))
    assert err3 < 3e-2, f"mismatch (bf16 out): max abs err {err3}"

    print("KERNEL_OK")
</pallas_src>

<mosaic_0001>
module attributes {stable_mosaic.version = 11 : i64} {
  func.func @kernel(%arg0: i32, %arg1: memref<1x8x32xbf16, #tpu.memory_space<vmem>>, %arg2: memref<1x8x1xf32, #tpu.memory_space<vmem>>, %arg3: memref<32x96xbf16, #tpu.memory_space<vmem>>, %arg4: memref<1x96xf32, #tpu.memory_space<vmem>>, %arg5: memref<1x8x32xf32, #tpu.memory_space<vmem>>) attributes {dimension_semantics = [#tpu.dimension_semantics<parallel>], iteration_bounds = array<i64: 2>, scalar_prefetch = 0 : i64, scratch_operands = 0 : i64, tpu.core_type = #tpu.core_type<tc>, window_params = [{transform_indices = @transform_0, window_bounds = array<i64: 1, 8, 32>}, {transform_indices = @transform_1, window_bounds = array<i64: 1, 8, 1>}, {pipeline_mode = #tpu.pipeline_mode<synchronous>, transform_indices = @transform_2, window_bounds = array<i64: 32, 96>}, {pipeline_mode = #tpu.pipeline_mode<synchronous>, transform_indices = @transform_3, window_bounds = array<i64: 1, 96>}, {transform_indices = @transform_4, window_bounds = array<i64: 1, 8, 32>}]} {
    %c0 = arith.constant 0 : index
    %c0_0 = arith.constant 0 : index
    %c0_1 = arith.constant 0 : index
    %0 = vector.load %arg1[%c0, %c0_0, %c0_1] : memref<1x8x32xbf16, #tpu.memory_space<vmem>>, vector<1x8x32xbf16>
    %1 = vector.shape_cast %0 : vector<1x8x32xbf16> to vector<8x32xbf16>
    %c0_2 = arith.constant 0 : index
    %c0_3 = arith.constant 0 : index
    %2 = vector.load %arg3[%c0_2, %c0_3] : memref<32x96xbf16, #tpu.memory_space<vmem>>, vector<32x96xbf16>
    %cst = arith.constant dense<0.000000e+00> : vector<8x96xf32>
    %3 = tpu.matmul %1, %2, %cst {dimension_numbers = #tpu.dot_dimension_numbers<[1], [0], [0], [1], [0, 0, 1, 1], [], []>} : vector<8x32xbf16>, vector<32x96xbf16>, vector<8x96xf32> -> vector<8x96xf32>
    %c0_4 = arith.constant 0 : index
    %c0_5 = arith.constant 0 : index
    %4 = vector.load %arg4[%c0_4, %c0_5] : memref<1x96xf32, #tpu.memory_space<vmem>>, vector<1x96xf32>
    %5 = vector.broadcast %4 : vector<1x96xf32> to vector<8x96xf32>
    %6 = arith.addf %3, %5 : vector<8x96xf32>
    %7 = vector.extract_strided_slice %6 {offsets = [0, 64], sizes = [8, 32], strides = [1, 1]} : vector<8x96xf32> to vector<8x32xf32>
    %8 = vector.extract_strided_slice %6 {offsets = [0, 0], sizes = [8, 32], strides = [1, 1]} : vector<8x96xf32> to vector<8x32xf32>
    %9 = arith.truncf %8 : vector<8x32xf32> to vector<8x32xbf16>
    %10 = vector.extract_strided_slice %6 {offsets = [0, 32], sizes = [8, 32], strides = [1, 1]} : vector<8x96xf32> to vector<8x32xf32>
    %11 = arith.addf %10, %7 : vector<8x32xf32>
    %12 = arith.truncf %11 : vector<8x32xf32> to vector<8x32xbf16>
    %13 = arith.truncf %7 : vector<8x32xf32> to vector<8x32xbf16>
    %c0_6 = arith.constant 0 : index
    %c0_7 = arith.constant 0 : index
    %c0_8 = arith.constant 0 : index
    %14 = vector.load %arg2[%c0_6, %c0_7, %c0_8] : memref<1x8x1xf32, #tpu.memory_space<vmem>>, vector<1x8x1xf32>
    %cst_9 = arith.constant 0.000000e+00 : f32
    %15 = vector.broadcast %cst_9 : f32 to vector<1x8x1xf32>
    %16 = arith.cmpf one, %14, %15 : vector<1x8x1xf32>
    %17 = vector.extract_strided_slice %9 {offsets = [0, 0], sizes = [8, 8], strides = [1, 1]} : vector<8x32xbf16> to vector<8x8xbf16>
    %18 = vector.shape_cast %17 : vector<8x8xbf16> to vector<1x8x8xbf16>
    %19 = vector.extract_strided_slice %12 {offsets = [0, 0], sizes = [8, 8], strides = [1, 1]} : vector<8x32xbf16> to vector<8x8xbf16>
    %20 = vector.shape_cast %19 : vector<8x8xbf16> to vector<1x8x8xbf16>
    %21 = vector.extract_strided_slice %13 {offsets = [0, 0], sizes = [8, 8], strides = [1, 1]} : vector<8x32xbf16> to vector<8x8xbf16>
    %22 = vector.shape_cast %21 : vector<8x8xbf16> to vector<1x8x8xbf16>
    "tpu.trace_start"() <{level = 10 : i32, message = "bqd,bkd->bqk"}> : () -> ()
    %cst_10 = arith.constant dense<0.000000e+00> : vector<1x8x8xf32>
    %23 = tpu.matmul %18, %20, %cst_10 {dimension_numbers = #tpu.dot_dimension_numbers<[2], [2], [1], [1], [0, 0, 0, 1, 1, 1], [0], [0]>} : vector<1x8x8xbf16>, vector<1x8x8xbf16>, vector<1x8x8xf32> -> vector<1x8x8xf32>
    %cst_11 = arith.constant -1.000000e+04 : f32
    "tpu.trace_stop"() : () -> ()
    %24 = vector.shape_cast %16 : vector<1x8x1xi1> to vector<1x8x1xi1>
    %25 = vector.broadcast %24 : vector<1x8x1xi1> to vector<1x8x8xi1>
    %26 = vector.broadcast %cst_11 : f32 to vector<1x8x8xf32>
    %27 = arith.select %25, %23, %26 : vector<1x8x8xi1>, vector<1x8x8xf32>
    %cst_12 = arith.constant dense<0xFF800000> : vector<1x8xf32>
    %28 = vector.multi_reduction <maximumf>, %27, %cst_12 [2] : vector<1x8x8xf32> to vector<1x8xf32>
    %29 = vector.shape_cast %28 : vector<1x8xf32> to vector<1x8x1xf32>
    %30 = vector.broadcast %29 : vector<1x8x1xf32> to vector<1x8x8xf32>
    %31 = arith.subf %27, %30 : vector<1x8x8xf32>
    %32 = math.exp %31 : vector<1x8x8xf32>
    %cst_13 = arith.constant dense<0.000000e+00> : vector<1x8xf32>
    %33 = vector.multi_reduction <add>, %32, %cst_13 [2] : vector<1x8x8xf32> to vector<1x8xf32>
    %34 = vector.shape_cast %33 : vector<1x8xf32> to vector<1x8x1xf32>
    %35 = tpu.reciprocal %34 {approx = true} : vector<1x8x1xf32> -> vector<1x8x1xf32>
    %36 = vector.broadcast %35 : vector<1x8x1xf32> to vector<1x8x8xf32>
    %37 = arith.mulf %32, %36 : vector<1x8x8xf32>
    %38 = arith.truncf %37 : vector<1x8x8xf32> to vector<1x8x8xbf16>
    "tpu.trace_start"() <{level = 10 : i32, message = "bqk,bkd->bqd"}> : () -> ()
    %cst_14 = arith.constant dense<0.000000e+00> : vector<1x8x8xf32>
    %39 = tpu.matmul %38, %22, %cst_14 {dimension_numbers = #tpu.dot_dimension_numbers<[2], [1], [1], [2], [0, 0, 0, 1, 1, 2], [0], [0]>} : vector<1x8x8xbf16>, vector<1x8x8xbf16>, vector<1x8x8xf32> -> vector<1x8x8xf32>
    "tpu.trace_stop"() : () -> ()
    %c0_15 = arith.constant 0 : index
    %c0_16 = arith.constant 0 : index
    %c0_17 = arith.constant 0 : index
    %40 = vector.load %arg5[%c0_15, %c0_16, %c0_17] : memref<1x8x32xf32, #tpu.memory_space<vmem>>, vector<1x8x8xf32>
    tpu.vector_store %arg5[%c0_15, %c0_16, %c0_17], %39 {strides = array<i32>} : memref<1x8x32xf32, #tpu.memory_space<vmem>>, vector<1x8x8xf32>,
    %41 = vector.extract_strided_slice %9 {offsets = [0, 8], sizes = [8, 8], strides = [1, 1]} : vector<8x32xbf16> to vector<8x8xbf16>
    %42 = vector.shape_cast %41 : vector<8x8xbf16> to vector<1x8x8xbf16>
    %43 = vector.extract_strided_slice %12 {offsets = [0, 8], sizes = [8, 8], strides = [1, 1]} : vector<8x32xbf16> to vector<8x8xbf16>
    %44 = vector.shape_cast %43 : vector<8x8xbf16> to vector<1x8x8xbf16>
    %45 = vector.extract_strided_slice %13 {offsets = [0, 8], sizes = [8, 8], strides = [1, 1]} : vector<8x32xbf16> to vector<8x8xbf16>
    %46 = vector.shape_cast %45 : vector<8x8xbf16> to vector<1x8x8xbf16>
    "tpu.trace_start"() <{level = 10 : i32, message = "bqd,bkd->bqk"}> : () -> ()
    %cst_18 = arith.constant dense<0.000000e+00> : vector<1x8x8xf32>
    %47 = tpu.matmul %42, %44, %cst_18 {dimension_numbers = #tpu.dot_dimension_numbers<[2], [2], [1], [1], [0, 0, 0, 1, 1, 1], [0], [0]>} : vector<1x8x8xbf16>, vector<1x8x8xbf16>, vector<1x8x8xf32> -> vector<1x8x8xf32>
    %cst_19 = arith.constant -1.000000e+04 : f32
    "tpu.trace_stop"() : () -> ()
    %48 = vector.shape_cast %16 : vector<1x8x1xi1> to vector<1x8x1xi1>
    %49 = vector.broadcast %48 : vector<1x8x1xi1> to vector<1x8x8xi1>
    %50 = vector.broadcast %cst_19 : f32 to vector<1x8x8xf32>
    %51 = arith.select %49, %47, %50 : vector<1x8x8xi1>, vector<1x8x8xf32>
    %cst_20 = arith.constant dense<0xFF800000> : vector<1x8xf32>
    %52 = vector.multi_reduction <maximumf>, %51, %cst_20 [2] : vector<1x8x8xf32> to vector<1x8xf32>
    %53 = vector.shape_cast %52 : vector<1x8xf32> to vector<1x8x1xf32>
    %54 = vector.broadcast %53 : vector<1x8x1xf32> to vector<1x8x8xf32>
    %55 = arith.subf %51, %54 : vector<1x8x8xf32>
    %56 = math.exp %55 : vector<1x8x8xf32>
    %cst_21 = arith.constant dense<0.000000e+00> : vector<1x8xf32>
    %57 = vector.multi_reduction <add>, %56, %cst_21 [2] : vector<1x8x8xf32> to vector<1x8xf32>
    %58 = vector.shape_cast %57 : vector<1x8xf32> to vector<1x8x1xf32>
    %59 = tpu.reciprocal %58 {approx = true} : vector<1x8x1xf32> -> vector<1x8x1xf32>
    %60 = vector.broadcast %59 : vector<1x8x1xf32> to vector<1x8x8xf32>
    %61 = arith.mulf %56, %60 : vector<1x8x8xf32>
    %62 = arith.truncf %61 : vector<1x8x8xf32> to vector<1x8x8xbf16>
    "tpu.trace_start"() <{level = 10 : i32, message = "bqk,bkd->bqd"}> : () -> ()
    %cst_22 = arith.constant dense<0.000000e+00> : vector<1x8x8xf32>
    %63 = tpu.matmul %62, %46, %cst_22 {dimension_numbers = #tpu.dot_dimension_numbers<[2], [1], [1], [2], [0, 0, 0, 1, 1, 2], [0], [0]>} : vector<1x8x8xbf16>, vector<1x8x8xbf16>, vector<1x8x8xf32> -> vector<1x8x8xf32>
    "tpu.trace_stop"() : () -> ()
    %c0_23 = arith.constant 0 : index
    %c0_24 = arith.constant 0 : index
    %c8 = arith.constant 8 : index
    %64 = vector.load %arg5[%c0_23, %c0_24, %c8] : memref<1x8x32xf32, #tpu.memory_space<vmem>>, vector<1x8x8xf32>
    tpu.vector_store %arg5[%c0_23, %c0_24, %c8], %63 {strides = array<i32>} : memref<1x8x32xf32, #tpu.memory_space<vmem>>, vector<1x8x8xf32>,
    %65 = vector.extract_strided_slice %9 {offsets = [0, 16], sizes = [8, 8], strides = [1, 1]} : vector<8x32xbf16> to vector<8x8xbf16>
    %66 = vector.shape_cast %65 : vector<8x8xbf16> to vector<1x8x8xbf16>
    %67 = vector.extract_strided_slice %12 {offsets = [0, 16], sizes = [8, 8], strides = [1, 1]} : vector<8x32xbf16> to vector<8x8xbf16>
    %68 = vector.shape_cast %67 : vector<8x8xbf16> to vector<1x8x8xbf16>
    %69 = vector.extract_strided_slice %13 {offsets = [0, 16], sizes = [8, 8], strides = [1, 1]} : vector<8x32xbf16> to vector<8x8xbf16>
    %70 = vector.shape_cast %69 : vector<8x8xbf16> to vector<1x8x8xbf16>
    "tpu.trace_start"() <{level = 10 : i32, message = "bqd,bkd->bqk"}> : () -> ()
    %cst_25 = arith.constant dense<0.000000e+00> : vector<1x8x8xf32>
    %71 = tpu.matmul %66, %68, %cst_25 {dimension_numbers = #tpu.dot_dimension_numbers<[2], [2], [1], [1], [0, 0, 0, 1, 1, 1], [0], [0]>} : vector<1x8x8xbf16>, vector<1x8x8xbf16>, vector<1x8x8xf32> -> vector<1x8x8xf32>
    %cst_26 = arith.constant -1.000000e+04 : f32
    "tpu.trace_stop"() : () -> ()
    %72 = vector.shape_cast %16 : vector<1x8x1xi1> to vector<1x8x1xi1>
    %73 = vector.broadcast %72 : vector<1x8x1xi1> to vector<1x8x8xi1>
    %74 = vector.broadcast %cst_26 : f32 to vector<1x8x8xf32>
    %75 = arith.select %73, %71, %74 : vector<1x8x8xi1>, vector<1x8x8xf32>
    %cst_27 = arith.constant dense<0xFF800000> : vector<1x8xf32>
    %76 = vector.multi_reduction <maximumf>, %75, %cst_27 [2] : vector<1x8x8xf32> to vector<1x8xf32>
    %77 = vector.shape_cast %76 : vector<1x8xf32> to vector<1x8x1xf32>
    %78 = vector.broadcast %77 : vector<1x8x1xf32> to vector<1x8x8xf32>
    %79 = arith.subf %75, %78 : vector<1x8x8xf32>
    %80 = math.exp %79 : vector<1x8x8xf32>
    %cst_28 = arith.constant dense<0.000000e+00> : vector<1x8xf32>
    %81 = vector.multi_reduction <add>, %80, %cst_28 [2] : vector<1x8x8xf32> to vector<1x8xf32>
    %82 = vector.shape_cast %81 : vector<1x8xf32> to vector<1x8x1xf32>
    %83 = tpu.reciprocal %82 {approx = true} : vector<1x8x1xf32> -> vector<1x8x1xf32>
    %84 = vector.broadcast %83 : vector<1x8x1xf32> to vector<1x8x8xf32>
    %85 = arith.mulf %80, %84 : vector<1x8x8xf32>
    %86 = arith.truncf %85 : vector<1x8x8xf32> to vector<1x8x8xbf16>
    "tpu.trace_start"() <{level = 10 : i32, message = "bqk,bkd->bqd"}> : () -> ()
    %cst_29 = arith.constant dense<0.000000e+00> : vector<1x8x8xf32>
    %87 = tpu.matmul %86, %70, %cst_29 {dimension_numbers = #tpu.dot_dimension_numbers<[2], [1], [1], [2], [0, 0, 0, 1, 1, 2], [0], [0]>} : vector<1x8x8xbf16>, vector<1x8x8xbf16>, vector<1x8x8xf32> -> vector<1x8x8xf32>
    "tpu.trace_stop"() : () -> ()
    %c0_30 = arith.constant 0 : index
    %c0_31 = arith.constant 0 : index
    %c16 = arith.constant 16 : index
    %88 = vector.load %arg5[%c0_30, %c0_31, %c16] : memref<1x8x32xf32, #tpu.memory_space<vmem>>, vector<1x8x8xf32>
    tpu.vector_store %arg5[%c0_30, %c0_31, %c16], %87 {strides = array<i32>} : memref<1x8x32xf32, #tpu.memory_space<vmem>>, vector<1x8x8xf32>,
    %89 = vector.extract_strided_slice %9 {offsets = [0, 24], sizes = [8, 8], strides = [1, 1]} : vector<8x32xbf16> to vector<8x8xbf16>
    %90 = vector.shape_cast %89 : vector<8x8xbf16> to vector<1x8x8xbf16>
    %91 = vector.extract_strided_slice %12 {offsets = [0, 24], sizes = [8, 8], strides = [1, 1]} : vector<8x32xbf16> to vector<8x8xbf16>
    %92 = vector.shape_cast %91 : vector<8x8xbf16> to vector<1x8x8xbf16>
    %93 = vector.extract_strided_slice %13 {offsets = [0, 24], sizes = [8, 8], strides = [1, 1]} : vector<8x32xbf16> to vector<8x8xbf16>
    %94 = vector.shape_cast %93 : vector<8x8xbf16> to vector<1x8x8xbf16>
    "tpu.trace_start"() <{level = 10 : i32, message = "bqd,bkd->bqk"}> : () -> ()
    %cst_32 = arith.constant dense<0.000000e+00> : vector<1x8x8xf32>
    %95 = tpu.matmul %90, %92, %cst_32 {dimension_numbers = #tpu.dot_dimension_numbers<[2], [2], [1], [1], [0, 0, 0, 1, 1, 1], [0], [0]>} : vector<1x8x8xbf16>, vector<1x8x8xbf16>, vector<1x8x8xf32> -> vector<1x8x8xf32>
    %cst_33 = arith.constant -1.000000e+04 : f32
    "tpu.trace_stop"() : () -> ()
    %96 = vector.shape_cast %16 : vector<1x8x1xi1> to vector<1x8x1xi1>
    %97 = vector.broadcast %96 : vector<1x8x1xi1> to vector<1x8x8xi1>
    %98 = vector.broadcast %cst_33 : f32 to vector<1x8x8xf32>
    %99 = arith.select %97, %95, %98 : vector<1x8x8xi1>, vector<1x8x8xf32>
    %cst_34 = arith.constant dense<0xFF800000> : vector<1x8xf32>
    %100 = vector.multi_reduction <maximumf>, %99, %cst_34 [2] : vector<1x8x8xf32> to vector<1x8xf32>
    %101 = vector.shape_cast %100 : vector<1x8xf32> to vector<1x8x1xf32>
    %102 = vector.broadcast %101 : vector<1x8x1xf32> to vector<1x8x8xf32>
    %103 = arith.subf %99, %102 : vector<1x8x8xf32>
    %104 = math.exp %103 : vector<1x8x8xf32>
    %cst_35 = arith.constant dense<0.000000e+00> : vector<1x8xf32>
    %105 = vector.multi_reduction <add>, %104, %cst_35 [2] : vector<1x8x8xf32> to vector<1x8xf32>
    %106 = vector.shape_cast %105 : vector<1x8xf32> to vector<1x8x1xf32>
    %107 = tpu.reciprocal %106 {approx = true} : vector<1x8x1xf32> -> vector<1x8x1xf32>
    %108 = vector.broadcast %107 : vector<1x8x1xf32> to vector<1x8x8xf32>
    %109 = arith.mulf %104, %108 : vector<1x8x8xf32>
    %110 = arith.truncf %109 : vector<1x8x8xf32> to vector<1x8x8xbf16>
    "tpu.trace_start"() <{level = 10 : i32, message = "bqk,bkd->bqd"}> : () -> ()
    %cst_36 = arith.constant dense<0.000000e+00> : vector<1x8x8xf32>
    %111 = tpu.matmul %110, %94, %cst_36 {dimension_numbers = #tpu.dot_dimension_numbers<[2], [1], [1], [2], [0, 0, 0, 1, 1, 2], [0], [0]>} : vector<1x8x8xbf16>, vector<1x8x8xbf16>, vector<1x8x8xf32> -> vector<1x8x8xf32>
    "tpu.trace_stop"() : () -> ()
    %c0_37 = arith.constant 0 : index
    %c0_38 = arith.constant 0 : index
    %c24 = arith.constant 24 : index
    %112 = vector.load %arg5[%c0_37, %c0_38, %c24] : memref<1x8x32xf32, #tpu.memory_space<vmem>>, vector<1x8x8xf32>
    tpu.vector_store %arg5[%c0_37, %c0_38, %c24], %111 {strides = array<i32>} : memref<1x8x32xf32, #tpu.memory_space<vmem>>, vector<1x8x8xf32>,
    return
  }
  func.func @transform_0(%arg0: i32) -> (i32, i32, i32) {
    %c0_i32 = arith.constant 0 : i32
    %c0_i32_0 = arith.constant 0 : i32
    %c0_i32_1 = arith.constant 0 : i32
    return %arg0, %c0_i32, %c0_i32_0 : i32, i32, i32
  }
  func.func @transform_1(%arg0: i32) -> (i32, i32, i32) {
    %c0_i32 = arith.constant 0 : i32
    %c0_i32_0 = arith.constant 0 : i32
    %c0_i32_1 = arith.constant 0 : i32
    return %arg0, %c0_i32, %c0_i32_0 : i32, i32, i32
  }
  func.func @transform_2(%arg0: i32) -> (i32, i32) {
    %c0_i32 = arith.constant 0 : i32
    %c0_i32_0 = arith.constant 0 : i32
    %c0_i32_1 = arith.constant 0 : i32
    return %c0_i32, %c0_i32_0 : i32, i32
  }
  func.func @transform_3(%arg0: i32) -> (i32, i32) {
    %c0_i32 = arith.constant 0 : i32
    %c0_i32_0 = arith.constant 0 : i32
    %c0_i32_1 = arith.constant 0 : i32
    return %c0_i32, %c0_i32_0 : i32, i32
  }
  func.func @transform_4(%arg0: i32) -> (i32, i32, i32) {
    %c0_i32 = arith.constant 0 : i32
    %c0_i32_0 = arith.constant 0 : i32
    %c0_i32_1 = arith.constant 0 : i32
    return %arg0, %c0_i32, %c0_i32_0 : i32, i32, i32
  }
}

</mosaic_0001>

<llo_original>
// kernel: tpu_custom_call.1
$region0: #{tpu_custom_call.1}
  #allocation0 [shape = 'u32[]', space=smem, size = 0x4, offset = 0x4, fixed_abs, tag = 'smem constant byte address 0x4 - core index']
  #allocation1 [shape = 'u32[144,128]{1,0:T(1,128)}', space=vmem, size = 0x12000, scoped, tag = 'internal scratch']
  %s0 = inlined_call_operand.hbm [shape: bf16[2,8,32], index: 0, kind: input, shape index: {}]
  %s1 = inlined_call_operand.vmem [shape: f32[2,8,1], index: 1, kind: input, shape index: {}]
  %s2 = inlined_call_operand.vmem [shape: bf16[32,96], index: 2, kind: input, shape index: {}]
  %s3 = inlined_call_operand.vmem [shape: f32[1,96], index: 3, kind: input, shape index: {}]
  %s4 = inlined_call_operand.hbm [shape: f32[2,8,32], index: 4, kind: output, shape index: {}]
  %s5 = sld [smem:[#allocation0]]
  $region53: #{tpu_custom_call.1} parent=0
    _
  %s7 = ssub.s32 1, %s5
  %s8 = scalar_select 0, %s7, %s5
  $region1: #{tpu_custom_call.1} parent=0
    #allocation2 [shape = 'u8[4096]{0}', space=vmem, size = 0x1000, scoped, tag = 'input window, operand 0']
    #allocation3 [shape = 's32[2]{0}', space=sflag, size = 0x8, scoped, tag = 'scoped memory for tpu_custom_call.1']
    #allocation4 [shape = 's32[2]{0}', space=sflag, size = 0x8, scoped, tag = 'scoped memory for tpu_custom_call.1']
    #allocation5 [shape = 'u8[8192]{0}', space=vmem, size = 0x2000, scoped, tag = 'output window, operand 0']
    %9 = vsyncpa [#allocation3], 0
    %s10 = scalar_lea.sflag [#allocation3], 1
    %11 = vsyncpa %s10, 0
    %12 = vsyncpa [#allocation4], 0
    %s13 = scalar_lea.sflag [#allocation4], 1
    %14 = vsyncpa %s13, 0
    loop: start=0, step=1, limit=4
    $region2: #{tpu_custom_call.1} parent=1 // loop_pre_header
      _
    $region3: #{tpu_custom_call.1} parent=1 // loop_header
      %s16 = sphi 0, %s20
      %p17 = scmp.ge.s32.totalorder %s16, 4
      %s26 = sphi 0, %s28
      %s29 = sphi 0, %s26
      %s30 = sphi 0, %s29
      %s46 = sphi 0, %s30
      %s52 = sphi 0, %s54
      %s55 = sphi 0, %s52
      %s56 = sphi 0, %s55
      %s72 = sphi 0, %s56
      %s76 = sphi 0, %s76
      %s78 = sphi 0, %s76
      %s79 = sphi 0, %s78
      %s93 = sphi 0, %s79
      %s97 = sphi 0, %s97
      %s99 = sphi 0, %s97
      %s100 = sphi 0, %s99
      %s114 = sphi 0, %s100
      %s120 = sphi 0, %s122
      %s123 = sphi 0, %s120
      %s124 = sphi 0, %s123
      %s140 = sphi 0, %s124
    $region4: #{tpu_custom_call.1} parent=1 // loop_header_branch
      %19 = sbr.rel (%p17) target = $region8
    $region5: #{tpu_custom_call.1} parent=1 // loop_body
      %s21 = ssub.s32 %s16, 1
      %s22 = ssub.s32 %s16, 2
      %s23 = sadd.s32 %s16, 1
      %s24 = ssub.s32 %s16, %s23
      %p25 = scmp.eq.s32.totalorder %s24, 0
      %s27 = sadd.s32 %s26, 1
      %s28 = scalar_select %p25, %s26, %s27
      %p31 = pneg %p25
      %p32 = scmp.eq.s32.totalorder %s16, 1
      %p33 = por %p31, %p32
      %p34 = scmp.ne.s32.totalorder %s26, %s29
      %p35 = scmp.eq.s32.totalorder %s16, 0
      %p36 = por %p34, %p35
      %p37 = scmp.ne.s32.totalorder %s26, %s29
      %p38 = scmp.eq.s32.totalorder %s21, 1
      %p39 = por %p37, %p38
      %p40 = scmp.ne.s32.totalorder %s29, %s30
      %p41 = scmp.eq.s32.totalorder %s21, 0
      %p42 = por %p40, %p41
      %p43 = scmp.ne.s32.totalorder %s29, %s30
      %p44 = scmp.eq.s32.totalorder %s22, 1
      %p45 = por %p43, %p44
      %p47 = scmp.ne.s32.totalorder %s30, %s46
      %p48 = scmp.eq.s32.totalorder %s22, 0
      %p49 = por %p47, %p48
      %s50 = ssub.s32 %s16, %s23
      %p51 = scmp.eq.s32.totalorder %s50, 0
      %s53 = sadd.s32 %s52, 1
      %s54 = scalar_select %p51, %s52, %s53
      %p57 = pneg %p51
      %p58 = scmp.eq.s32.totalorder %s16, 1
      %p59 = por %p57, %p58
      %p60 = scmp.ne.s32.totalorder %s52, %s55
      %p61 = scmp.eq.s32.totalorder %s16, 0
      %p62 = por %p60, %p61
      %p63 = scmp.ne.s32.totalorder %s52, %s55
      %p64 = scmp.eq.s32.totalorder %s21, 1
      %p65 = por %p63, %p64
      %p66 = scmp.ne.s32.totalorder %s55, %s56
      %p67 = scmp.eq.s32.totalorder %s21, 0
      %p68 = por %p66, %p67
      %p69 = scmp.ne.s32.totalorder %s55, %s56
      %p70 = scmp.eq.s32.totalorder %s22, 1
      %p71 = por %p69, %p70
      %p73 = scmp.ne.s32.totalorder %s56, %s72
      %p74 = scmp.eq.s32.totalorder %s22, 0
      %p75 = por %p73, %p74
      %s77 = sadd.s32 %s76, 1
      %p80 = scmp.eq.s32.totalorder %s16, 1
      %p81 = scmp.ne.s32.totalorder %s76, %s78
      %p82 = scmp.eq.s32.totalorder %s16, 0
      %p83 = por %p81, %p82
      %p84 = scmp.ne.s32.totalorder %s76, %s78
      %p85 = scmp.eq.s32.totalorder %s21, 1
      %p86 = por %p84, %p85
      %p87 = scmp.ne.s32.totalorder %s78, %s79
      %p88 = scmp.eq.s32.totalorder %s21, 0
      %p89 = por %p87, %p88
      %p90 = scmp.ne.s32.totalorder %s78, %s79
      %p91 = scmp.eq.s32.totalorder %s22, 1
      %p92 = por %p90, %p91
      %p94 = scmp.ne.s32.totalorder %s79, %s93
      %p95 = scmp.eq.s32.totalorder %s22, 0
      %p96 = por %p94, %p95
      %s98 = sadd.s32 %s97, 1
      %p101 = scmp.eq.s32.totalorder %s16, 1
      %p102 = scmp.ne.s32.totalorder %s97, %s99
      %p103 = scmp.eq.s32.totalorder %s16, 0
      %p104 = por %p102, %p103
      %p105 = scmp.ne.s32.totalorder %s97, %s99
      %p106 = scmp.eq.s32.totalorder %s21, 1
      %p107 = por %p105, %p106
      %p108 = scmp.ne.s32.totalorder %s99, %s100
      %p109 = scmp.eq.s32.totalorder %s21, 0
      %p110 = por %p108, %p109
      %p111 = scmp.ne.s32.totalorder %s99, %s100
      %p112 = scmp.eq.s32.totalorder %s22, 1
      %p113 = por %p111, %p112
      %p115 = scmp.ne.s32.totalorder %s100, %s114
      %p116 = scmp.eq.s32.totalorder %s22, 0
      %p117 = por %p115, %p116
      %s118 = ssub.s32 %s16, %s23
      %p119 = scmp.eq.s32.totalorder %s118, 0
      %s121 = sadd.s32 %s120, 1
      %s122 = scalar_select %p119, %s120, %s121
      %p125 = pneg %p119
      %p126 = scmp.eq.s32.totalorder %s16, 1
      %p127 = por %p125, %p126
      %p128 = scmp.ne.s32.totalorder %s120, %s123
      %p129 = scmp.eq.s32.totalorder %s16, 0
      %p130 = por %p128, %p129
      %p131 = scmp.ne.s32.totalorder %s120, %s123
      %p132 = scmp.eq.s32.totalorder %s21, 1
      %p133 = por %p131, %p132
      %p134 = scmp.ne.s32.totalorder %s123, %s124
      %p135 = scmp.eq.s32.totalorder %s21, 0
      %p136 = por %p134, %p135
      %p137 = scmp.ne.s32.totalorder %s123, %s124
      %p138 = scmp.eq.s32.totalorder %s22, 1
      %p139 = por %p137, %p138
      %p141 = scmp.ne.s32.totalorder %s124, %s140
      %p142 = scmp.eq.s32.totalorder %s22, 0
      %p143 = por %p141, %p142
      %p144 = scmp.le.s32.totalorder 1, %s16
      %p145 = scmp.lt.s32.totalorder %s16, 3
      %p146 = pnand %p144, %p145
      %p147 = pneg %p146
      // Predicated region
      $region9: #{tpu_custom_call.1} parent=5 // pred_check
        _
      $region10: #{tpu_custom_call.1} parent=5 // pred_check_branch
        %149 = sbr.rel (%p146) target = $region12
      $region11: #{tpu_custom_call.1} parent=5 // pred_region
        %s150 = ssub.s32 %s16, 1
        // Predicated region
        $region13: #{tpu_custom_call.1} parent=11 // pred_check
          %p151 = pneg %p89
        $region14: #{tpu_custom_call.1} parent=11 // pred_check_branch
          %153 = sbr.rel (%p151) target = $region16
        $region15: #{tpu_custom_call.1} parent=11 // pred_region
          _
        $region16: #{tpu_custom_call.1} parent=11 // pred_fallthru
          _
        // Predicated region
        $region17: #{tpu_custom_call.1} parent=11 // pred_check
          %p154 = pneg %p110
        $region18: #{tpu_custom_call.1} parent=11 // pred_check_branch
          %156 = sbr.rel (%p154) target = $region20
        $region19: #{tpu_custom_call.1} parent=11 // pred_region
          _
        $region20: #{tpu_custom_call.1} parent=11 // pred_fallthru
          _
      $region12: #{tpu_custom_call.1} parent=5 // pred_fallthru
        _
      %p157 = scmp.lt.s32.totalorder %s16, 2
      // Predicated region
      $region21: #{tpu_custom_call.1} parent=5 // pred_check
        %p158 = pneg %p157
      $region22: #{tpu_custom_call.1} parent=5 // pred_check_branch
        %160 = sbr.rel (%p158) target = $region24
      $region23: #{tpu_custom_call.1} parent=5 // pred_region
        // Predicated region
        $region25: #{tpu_custom_call.1} parent=23 // pred_check
          %p161 = pneg %p36
        $region26: #{tpu_custom_call.1} parent=23 // pred_check_branch
          %163 = sbr.rel (%p161) target = $region28
        $region27: #{tpu_custom_call.1} parent=23 // pred_region
          %s164 = sand.u32 %s26, 1
          %s165 = scalar_lea.sflag [#allocation3], %s164
          %s166 = sand.u32 %s26, 1
          %s167 = smul.addr %s166, 4
          %s168 = scalar_lea.vmem [#allocation2], %s167
          %s170 = ssub.s32 64, 64
          %171 = vsyncadd %s165, %s170
          %s172 = smul.addr %s16, 64
          %s173 = scalar_lea.hbm %s0, %s172
          %s175 = sshll.u32 %s168, 4
          %s176 = int_to_ptr.vmem [resolvable:$true] %s175
          %178 = dma.hbm_to_vmem [thread:$0]  %s173, 64, %s176, %s165
        $region28: #{tpu_custom_call.1} parent=23 // pred_fallthru
          _
        // Predicated region
        $region29: #{tpu_custom_call.1} parent=23 // pred_check
          %p179 = pneg %p62
        $region30: #{tpu_custom_call.1} parent=23 // pred_check_branch
          %181 = sbr.rel (%p179) target = $region32
        $region31: #{tpu_custom_call.1} parent=23 // pred_region
          %p182 = scmp.lt.s32.totalorder %s16, 1
          %s183 = scalar_select %p182, %s16, 1
          %s184 = smul.addr %s183, 8
          %s185 = scalar_lea.vmem %s1, %s184
        $region32: #{tpu_custom_call.1} parent=23 // pred_fallthru
          _
      $region24: #{tpu_custom_call.1} parent=5 // pred_fallthru
        _
      %p186 = scmp.le.s32.totalorder 1, %s16
      %p187 = scmp.lt.s32.totalorder %s16, 3
      %p188 = pnand %p186, %p187
      %p189 = pneg %p188
      // Predicated region
      $region33: #{tpu_custom_call.1} parent=5 // pred_check
        _
      $region34: #{tpu_custom_call.1} parent=5 // pred_check_branch
        %191 = sbr.rel (%p188) target = $region36
      $region35: #{tpu_custom_call.1} parent=5 // pred_region
        %s192 = ssub.s32 %s16, 1
        %s193 = sand.u32 %s29, 1
        %s194 = scalar_lea.sflag [#allocation3], %s193
        %s195 = sand.u32 %s29, 1
        %s196 = smul.addr %s195, 4
        %s197 = scalar_lea.vmem [#allocation2], %s196
        // Predicated region
        $region37: #{tpu_custom_call.1} parent=35 // pred_check
          %p198 = pneg %p42
        $region38: #{tpu_custom_call.1} parent=35 // pred_check_branch
          %200 = sbr.rel (%p198) target = $region40
        $region39: #{tpu_custom_call.1} parent=35 // pred_region
          %201 = dma.done %s194, 64
        $region40: #{tpu_custom_call.1} parent=35 // pred_fallthru
          _
        %s202 = sand.u32 %s29, 1
        %s203 = scalar_lea.sflag [#allocation3], %s202
        %s204 = sand.u32 %s29, 1
        %s205 = smul.addr %s204, 4
        %s206 = scalar_lea.vmem [#allocation2], %s205
        %p207 = pneg %p42
        %p208 = pneg %p39
        %p209 = scmp.lt.s32.totalorder %s21, 1
        %s210 = scalar_select %p209, %s21, 1
        %s211 = smul.addr %s210, 8
        %s212 = scalar_lea.vmem %s1, %s211
        %p213 = pneg %p68
        %p214 = pneg %p65
        %p215 = pneg %p89
        %p216 = pneg %p86
        %p217 = pneg %p110
        %p218 = pneg %p107
        %p219 = pneg %p136
        %p220 = pneg %p133
        %s221 = sand.u32 %s123, 1
        %s222 = scalar_lea.sflag [#allocation4], %s221
        %s223 = sand.u32 %s123, 1
        %s224 = smul.addr %s223, 8
        %s225 = scalar_lea.vmem [#allocation5], %s224
        %p226 = scmp.lt.s32.totalorder %s21, 1
        %s227 = scalar_select %p226, %s21, 1
        %s228 = smul.addr %s227, 8
        %s229 = scalar_lea.vmem %s1, %s228
        %v231 = vld [vmem:[%s197] sm:$0xf]
        %v232 = vld [vmem:[%s2] sm:$0xf]
        %v233 = vld [vmem:[%s2 + $0x4] sm:$0xf]
        %v234 = vld [vmem:[%s2 + $0x8] sm:$0xf]
        %v235 = vld [vmem:[%s2 + $0xc] sm:$0xf]
        %v236 = vld [vmem:[%s3] sm:$0x1]
        %v238 = vlaneseq
        %v239 = vshrl.u32 %v238, 7
        %v240 = vsub.s32 0, %v239
        %v241 = vrot.slane %v236, %v240
        %v247 = vunpack.c.l.b16 %v232
        %v248 = vunpack.c.l.b16 %v233
        %v249 = vunpack.c.l.b16 %v234
        %v250 = vunpack.c.l.b16 %v235
        %v251 = vpack.c.b16 %v248, %v247
        %v252 = vpack.c.b16 %v250, %v249
        %vm255 = vcmask 261120
        %v257 = vsel %vm255, %v231, 0
        %259 = vmatprep.subr.bf16.mxu0 0
        %260 = vmatpush1.bf16.msra.mxu0 0
        %261 = vmatprep.subr.bf16.mxu0 0
        %262 = vmatpush1.bf16.msra.mxu0 0
        %263 = vmatprep.subr.bf16.mxu0 0
        %264 = vmatpush1.bf16.msra.mxu0 0
        %265 = vmatprep.subr.bf16.mxu0 0
        %266 = vmatpush1.bf16.msra.mxu0 0
        %267 = vmatprep.subr.bf16.mxu0 0
        %268 = vmatpush1.bf16.msra.mxu0 0
        %269 = vmatprep.subr.bf16.mxu0 0
        %270 = vmatpush1.bf16.msra.mxu0 0
        %271 = vmatprep.subr.bf16.mxu0 0
        %272 = vmatpush1.bf16.msra.mxu0 %v252
        %273 = vmatprep.subr.bf16.mxu0 0
        %274 = vmatpush1.bf16.msra.mxu0 %v251
        %275 = vmatprep.subr.bf16.mxu0 0
        %276 = vmatpush2.bf16.msra.mxu0 0
        %277 = vmatprep.subr.bf16.mxu0 0
        %278 = vmatpush2.bf16.msra.mxu0 0
        %279 = vmatprep.subr.bf16.mxu0 0
        %280 = vmatpush2.bf16.msra.mxu0 0
        %281 = vmatprep.subr.bf16.mxu0 0
        %282 = vmatpush2.bf16.msra.mxu0 0
        %283 = vmatprep.subr.bf16.mxu0 0
        %284 = vmatpush2.bf16.msra.mxu0 0
        %285 = vmatprep.subr.bf16.mxu0 0
        %286 = vmatpush2.bf16.msra.mxu0 0
        %287 = vmatprep.subr.bf16.mxu0 0
        %288 = vmatpush2.bf16.msra.mxu0 0
        %289 = vmatprep.subr.bf16.mxu0 0
        %290 = vmatpush2.bf16.msra.mxu0 0
        %291 = vmatprep.mubr.bf16.mxu0 0
        %292 = vmatmul.mubr.bf16.gmra.mxu0 %v257
        %v293 = vpop.f32.mrf.mxu0
        %v294 = vadd.f32 %v241, %v293
        %v295 = vpop.f32.mrf.mxu0
        %v296 = vpop.f32.mrf.mxu0
        %v297 = vpop.f32.mrf.mxu0
        %298 = vdwg.mxu0
        %v299 = vpack.c.bf16 %v294, %v294
        %301 = vrot.lane.b32.xlu0 %v294, 96
        %v302 = vpop.permute.xlu0 %301
        %v304 = vadd.f32 %v294, %v302
        %v305 = vpack.c.bf16 %v304, %v304
        %v306 = vld [vmem:[%s229] sm:$0xff]
        %vm307 = vcmp.ne.f32.partialorder %v306, 0.0
        %309 = vrot.lane.b32.xlu0 %v305, 96
        %v310 = vpop.permute.xlu0 %309
        %vm311 = vcmask 64512
        %v313 = vsel %vm311, %v299, 0
        %v316 = vsel %vm311, %v310, 0
        %318 = vmatprep.subr.bf16.mxu0 0
        %319 = vmatpush1.bf16.xpose.msra.mxu0 0
        %320 = vmatprep.subr.bf16.mxu0 0
        %321 = vmatpush1.bf16.xpose.msra.mxu0 0
        %322 = vmatprep.subr.bf16.mxu0 0
        %323 = vmatpush1.bf16.xpose.msra.mxu0 0
        %324 = vmatprep.subr.bf16.mxu0 0
        %325 = vmatpush1.bf16.xpose.msra.mxu0 0
        %326 = vmatprep.subr.bf16.mxu0 0
        %327 = vmatpush1.bf16.xpose.msra.mxu0 0
        %328 = vmatprep.subr.bf16.mxu0 0
        %329 = vmatpush1.bf16.xpose.msra.mxu0 0
        %330 = vmatprep.subr.bf16.mxu0 0
        %331 = vmatpush1.bf16.xpose.msra.mxu0 0
        %332 = vmatprep.subr.bf16.mxu0 0
        %333 = vmatpush1.bf16.xpose.msra.mxu0 %v316
        %334 = vmatprep.subr.bf16.mxu0 0
        %335 = vmatpush2.bf16.xpose.msra.mxu0 0
        %336 = vmatprep.subr.bf16.mxu0 0
        %337 = vmatpush2.bf16.xpose.msra.mxu0 0
        %338 = vmatprep.subr.bf16.mxu0 0
        %339 = vmatpush2.bf16.xpose.msra.mxu0 0
        %340 = vmatprep.subr.bf16.mxu0 0
        %341 = vmatpush2.bf16.xpose.msra.mxu0 0
        %342 = vmatprep.subr.bf16.mxu0 0
        %343 = vmatpush2.bf16.xpose.msra.mxu0 0
        %344 = vmatprep.subr.bf16.mxu0 0
        %345 = vmatpush2.bf16.xpose.msra.mxu0 0
        %346 = vmatprep.subr.bf16.mxu0 0
        %347 = vmatpush2.bf16.xpose.msra.mxu0 0
        %348 = vmatprep.subr.bf16.mxu0 0
        %349 = vmatpush2.bf16.xpose.msra.mxu0 0
        %350 = vmatprep.mubr.bf16.mxu0 0
        %351 = vmatmul.mubr.bf16.gmra.mxu0 %v313
        %v352 = vpop.f32.mrf.mxu0
        %v353 = vadd.f32 0.0, %v352
        %v354 = vpop.f32.mrf.mxu0
        %v355 = vpop.f32.mrf.mxu0
        %v356 = vpop.f32.mrf.mxu0
        %357 = vdwg.mxu0
        %v358 = vsel %vm307, 1, 0
        %359 = vset.pattern.permute.xlu0 0
        %360 = vperm.xlu0 %359, %v358
        %v361 = vpop.permute.xlu0 %360
        %vm362 = vcmp.eq.s32.totalorder %v361, 1
        %v363 = vsel %vm362, %v353, -10000.0
        %v364 = vsel %vm311, %v363, -inf
        %365 = vmax.xlane.f32.xlu0 %v364
        %v366 = vpop.xlane.xlu0 %365
        %v367 = vsub.f32 %v363, %v366
        %v368 = vmul.f32 %v367, 1.442695
        %v369 = vpow.pop %v368
        %v370 = vsel %vm311, %v369, 0.0
        %371 = vadd.xlane.f32.xlu0 %v370
        %v372 = vpop.xlane.xlu0 %371
        %v373 = vrcp.pop %v372
        %v374 = vmul.f32 %v369, %v373
        %v375 = vpack.c.bf16 %v374, %v374
        %377 = vrot.lane.b32.xlu0 %v299, 64
        %v378 = vpop.permute.xlu0 %377
        %v380 = vsel %vm311, %v375, 0
        %vm382 = vcmask 1043456
        %v384 = vsel %vm382, %v378, 0
        %386 = vmatprep.subr.bf16.mxu0 0
        %387 = vmatpush1.bf16.msra.mxu0 0
        %388 = vmatprep.subr.bf16.mxu0 0
        %389 = vmatpush1.bf16.msra.mxu0 0
        %390 = vmatprep.subr.bf16.mxu0 0
        %391 = vmatpush1.bf16.msra.mxu0 0
        %392 = vmatprep.subr.bf16.mxu0 0
        %393 = vmatpush1.bf16.msra.mxu0 0
        %394 = vmatprep.subr.bf16.mxu0 0
        %395 = vmatpush1.bf16.msra.mxu0 0
        %396 = vmatprep.subr.bf16.mxu0 0
        %397 = vmatpush1.bf16.msra.mxu0 0
        %398 = vmatprep.subr.bf16.mxu0 0
        %399 = vmatpush1.bf16.msra.mxu0 0
        %400 = vmatprep.subr.bf16.mxu0 0
        %401 = vmatpush1.bf16.msra.mxu0 %v384
        %402 = vmatprep.subr.bf16.mxu0 0
        %403 = vmatpush2.bf16.msra.mxu0 0
        %404 = vmatprep.subr.bf16.mxu0 0
        %405 = vmatpush2.bf16.msra.mxu0 0
        %406 = vmatprep.subr.bf16.mxu0 0
        %407 = vmatpush2.bf16.msra.mxu0 0
        %408 = vmatprep.subr.bf16.mxu0 0
        %409 = vmatpush2.bf16.msra.mxu0 0
        %410 = vmatprep.subr.bf16.mxu0 0
        %411 = vmatpush2.bf16.msra.mxu0 0
        %412 = vmatprep.subr.bf16.mxu0 0
        %413 = vmatpush2.bf16.msra.mxu0 0
        %414 = vmatprep.subr.bf16.mxu0 0
        %415 = vmatpush2.bf16.msra.mxu0 0
        %416 = vmatprep.subr.bf16.mxu0 0
        %417 = vmatpush2.bf16.msra.mxu0 0
        %418 = vmatprep.mubr.bf16.mxu0 0
        %419 = vmatmul.mubr.bf16.gmra.mxu0 %v380
        %v420 = vpop.f32.mrf.mxu0
        %v421 = vadd.f32 0.0, %v420
        %v422 = vpop.f32.mrf.mxu0
        %v423 = vpop.f32.mrf.mxu0
        %v424 = vpop.f32.mrf.mxu0
        %425 = vdwg.mxu0
        %426 = vst.msk [vmem:[%s225] sm:$0xff] %vm311, %v421
        %427 = vrot.lane.b32.xlu0 %v299, 120
        %v428 = vpop.permute.xlu0 %427
        %429 = vrot.lane.b32.xlu0 %v305, 88
        %v430 = vpop.permute.xlu0 %429
        %v432 = vsel %vm311, %v428, 0
        %v435 = vsel %vm311, %v430, 0
        %437 = vmatprep.subr.bf16.mxu0 0
        %438 = vmatpush1.bf16.xpose.msra.mxu0 0
        %439 = vmatprep.subr.bf16.mxu0 0
        %440 = vmatpush1.bf16.xpose.msra.mxu0 0
        %441 = vmatprep.subr.bf16.mxu0 0
        %442 = vmatpush1.bf16.xpose.msra.mxu0 0
        %443 = vmatprep.subr.bf16.mxu0 0
        %444 = vmatpush1.bf16.xpose.msra.mxu0 0
        %445 = vmatprep.subr.bf16.mxu0 0
        %446 = vmatpush1.bf16.xpose.msra.mxu0 0
        %447 = vmatprep.subr.bf16.mxu0 0
        %448 = vmatpush1.bf16.xpose.msra.mxu0 0
        %449 = vmatprep.subr.bf16.mxu0 0
        %450 = vmatpush1.bf16.xpose.msra.mxu0 0
        %451 = vmatprep.subr.bf16.mxu0 0
        %452 = vmatpush1.bf16.xpose.msra.mxu0 %v435
        %453 = vmatprep.subr.bf16.mxu0 0
        %454 = vmatpush2.bf16.xpose.msra.mxu0 0
        %455 = vmatprep.subr.bf16.mxu0 0
        %456 = vmatpush2.bf16.xpose.msra.mxu0 0
        %457 = vmatprep.subr.bf16.mxu0 0
        %458 = vmatpush2.bf16.xpose.msra.mxu0 0
        %459 = vmatprep.subr.bf16.mxu0 0
        %460 = vmatpush2.bf16.xpose.msra.mxu0 0
        %461 = vmatprep.subr.bf16.mxu0 0
        %462 = vmatpush2.bf16.xpose.msra.mxu0 0
        %463 = vmatprep.subr.bf16.mxu0 0
        %464 = vmatpush2.bf16.xpose.msra.mxu0 0
        %465 = vmatprep.subr.bf16.mxu0 0
        %466 = vmatpush2.bf16.xpose.msra.mxu0 0
        %467 = vmatprep.subr.bf16.mxu0 0
        %468 = vmatpush2.bf16.xpose.msra.mxu0 0
        %469 = vmatprep.mubr.bf16.mxu0 0
        %470 = vmatmul.mubr.bf16.gmra.mxu0 %v432
        %v471 = vpop.f32.mrf.mxu0
        %v472 = vadd.f32 0.0, %v471
        %v473 = vpop.f32.mrf.mxu0
        %v474 = vpop.f32.mrf.mxu0
        %v475 = vpop.f32.mrf.mxu0
        %476 = vdwg.mxu0
        %v477 = vsel %vm362, %v472, -10000.0
        %v478 = vsel %vm311, %v477, -inf
        %479 = vmax.xlane.f32.xlu0 %v478
        %v480 = vpop.xlane.xlu0 %479
        %v481 = vsub.f32 %v477, %v480
        %v482 = vmul.f32 %v481, 1.442695
        %v483 = vpow.pop %v482
        %v484 = vsel %vm311, %v483, 0.0
        %485 = vadd.xlane.f32.xlu0 %v484
        %v486 = vpop.xlane.xlu0 %485
        %v487 = vrcp.pop %v486
        %v488 = vmul.f32 %v483, %v487
        %v489 = vpack.c.bf16 %v488, %v488
        %490 = vrot.lane.b32.xlu0 %v299, 56
        %v491 = vpop.permute.xlu0 %490
        %v493 = vsel %vm311, %v489, 0
        %v496 = vsel %vm382, %v491, 0
        %498 = vmatprep.subr.bf16.mxu0 0
        %499 = vmatpush1.bf16.msra.mxu0 0
        %500 = vmatprep.subr.bf16.mxu0 0
        %501 = vmatpush1.bf16.msra.mxu0 0
        %502 = vmatprep.subr.bf16.mxu0 0
        %503 = vmatpush1.bf16.msra.mxu0 0
        %504 = vmatprep.subr.bf16.mxu0 0
        %505 = vmatpush1.bf16.msra.mxu0 0
        %506 = vmatprep.subr.bf16.mxu0 0
        %507 = vmatpush1.bf16.msra.mxu0 0
        %508 = vmatprep.subr.bf16.mxu0 0
        %509 = vmatpush1.bf16.msra.mxu0 0
        %510 = vmatprep.subr.bf16.mxu0 0
        %511 = vmatpush1.bf16.msra.mxu0 0
        %512 = vmatprep.subr.bf16.mxu0 0
        %513 = vmatpush1.bf16.msra.mxu0 %v496
        %514 = vmatprep.subr.bf16.mxu0 0
        %515 = vmatpush2.bf16.msra.mxu0 0
        %516 = vmatprep.subr.bf16.mxu0 0
        %517 = vmatpush2.bf16.msra.mxu0 0
        %518 = vmatprep.subr.bf16.mxu0 0
        %519 = vmatpush2.bf16.msra.mxu0 0
        %520 = vmatprep.subr.bf16.mxu0 0
        %521 = vmatpush2.bf16.msra.mxu0 0
        %522 = vmatprep.subr.bf16.mxu0 0
        %523 = vmatpush2.bf16.msra.mxu0 0
        %524 = vmatprep.subr.bf16.mxu0 0
        %525 = vmatpush2.bf16.msra.mxu0 0
        %526 = vmatprep.subr.bf16.mxu0 0
        %527 = vmatpush2.bf16.msra.mxu0 0
        %528 = vmatprep.subr.bf16.mxu0 0
        %529 = vmatpush2.bf16.msra.mxu0 0
        %530 = vmatprep.mubr.bf16.mxu0 0
        %531 = vmatmul.mubr.bf16.gmra.mxu0 %v493
        %v532 = vpop.f32.mrf.mxu0
        %v533 = vadd.f32 0.0, %v532
        %v534 = vpop.f32.mrf.mxu0
        %v535 = vpop.f32.mrf.mxu0
        %v536 = vpop.f32.mrf.mxu0
        %537 = vdwg.mxu0
        %539 = vrot.lane.b32.xlu0 %v533, 8
        %v540 = vpop.permute.xlu0 %539
        %vm542 = vcmask 130112
        %543 = vst.msk [vmem:[%s225] sm:$0xff] %vm542, %v540
        %544 = vrot.lane.b32.xlu0 %v299, 112
        %v545 = vpop.permute.xlu0 %544
        %546 = vrot.lane.b32.xlu0 %v305, 80
        %v547 = vpop.permute.xlu0 %546
        %v549 = vsel %vm311, %v545, 0
        %v552 = vsel %vm311, %v547, 0
        %554 = vmatprep.subr.bf16.mxu0 0
        %555 = vmatpush1.bf16.xpose.msra.mxu0 0
        %556 = vmatprep.subr.bf16.mxu0 0
        %557 = vmatpush1.bf16.xpose.msra.mxu0 0
        %558 = vmatprep.subr.bf16.mxu0 0
        %559 = vmatpush1.bf16.xpose.msra.mxu0 0
        %560 = vmatprep.subr.bf16.mxu0 0
        %561 = vmatpush1.bf16.xpose.msra.mxu0 0
        %562 = vmatprep.subr.bf16.mxu0 0
        %563 = vmatpush1.bf16.xpose.msra.mxu0 0
        %564 = vmatprep.subr.bf16.mxu0 0
        %565 = vmatpush1.bf16.xpose.msra.mxu0 0
        %566 = vmatprep.subr.bf16.mxu0 0
        %567 = vmatpush1.bf16.xpose.msra.mxu0 0
        %568 = vmatprep.subr.bf16.mxu0 0
        %569 = vmatpush1.bf16.xpose.msra.mxu0 %v552
        %570 = vmatprep.subr.bf16.mxu0 0
        %571 = vmatpush2.bf16.xpose.msra.mxu0 0
        %572 = vmatprep.subr.bf16.mxu0 0
        %573 = vmatpush2.bf16.xpose.msra.mxu0 0
        %574 = vmatprep.subr.bf16.mxu0 0
        %575 = vmatpush2.bf16.xpose.msra.mxu0 0
        %576 = vmatprep.subr.bf16.mxu0 0
        %577 = vmatpush2.bf16.xpose.msra.mxu0 0
        %578 = vmatprep.subr.bf16.mxu0 0
        %579 = vmatpush2.bf16.xpose.msra.mxu0 0
        %580 = vmatprep.subr.bf16.mxu0 0
        %581 = vmatpush2.bf16.xpose.msra.mxu0 0
        %582 = vmatprep.subr.bf16.mxu0 0
        %583 = vmatpush2.bf16.xpose.msra.mxu0 0
        %584 = vmatprep.subr.bf16.mxu0 0
        %585 = vmatpush2.bf16.xpose.msra.mxu0 0
        %586 = vmatprep.mubr.bf16.mxu0 0
        %587 = vmatmul.mubr.bf16.gmra.mxu0 %v549
        %v588 = vpop.f32.mrf.mxu0
        %v589 = vadd.f32 0.0, %v588
        %v590 = vpop.f32.mrf.mxu0
        %v591 = vpop.f32.mrf.mxu0
        %v592 = vpop.f32.mrf.mxu0
        %593 = vdwg.mxu0
        %v594 = vsel %vm362, %v589, -10000.0
        %v595 = vsel %vm311, %v594, -inf
        %596 = vmax.xlane.f32.xlu0 %v595
        %v597 = vpop.xlane.xlu0 %596
        %v598 = vsub.f32 %v594, %v597
        %v599 = vmul.f32 %v598, 1.442695
        %v600 = vpow.pop %v599
        %v601 = vsel %vm311, %v600, 0.0
        %602 = vadd.xlane.f32.xlu0 %v601
        %v603 = vpop.xlane.xlu0 %602
        %v604 = vrcp.pop %v603
        %v605 = vmul.f32 %v600, %v604
        %v606 = vpack.c.bf16 %v605, %v605
        %607 = vrot.lane.b32.xlu0 %v299, 48
        %v608 = vpop.permute.xlu0 %607
        %v610 = vsel %vm311, %v606, 0
        %v613 = vsel %vm382, %v608, 0
        %615 = vmatprep.subr.bf16.mxu0 0
        %616 = vmatpush1.bf16.msra.mxu0 0
        %617 = vmatprep.subr.bf16.mxu0 0
        %618 = vmatpush1.bf16.msra.mxu0 0
        %619 = vmatprep.subr.bf16.mxu0 0
        %620 = vmatpush1.bf16.msra.mxu0 0
        %621 = vmatprep.subr.bf16.mxu0 0
        %622 = vmatpush1.bf16.msra.mxu0 0
        %623 = vmatprep.subr.bf16.mxu0 0
        %624 = vmatpush1.bf16.msra.mxu0 0
        %625 = vmatprep.subr.bf16.mxu0 0
        %626 = vmatpush1.bf16.msra.mxu0 0
        %627 = vmatprep.subr.bf16.mxu0 0
        %628 = vmatpush1.bf16.msra.mxu0 0
        %629 = vmatprep.subr.bf16.mxu0 0
        %630 = vmatpush1.bf16.msra.mxu0 %v613
        %631 = vmatprep.subr.bf16.mxu0 0
        %632 = vmatpush2.bf16.msra.mxu0 0
        %633 = vmatprep.subr.bf16.mxu0 0
        %634 = vmatpush2.bf16.msra.mxu0 0
        %635 = vmatprep.subr.bf16.mxu0 0
        %636 = vmatpush2.bf16.msra.mxu0 0
        %637 = vmatprep.subr.bf16.mxu0 0
        %638 = vmatpush2.bf16.msra.mxu0 0
        %639 = vmatprep.subr.bf16.mxu0 0
        %640 = vmatpush2.bf16.msra.mxu0 0
        %641 = vmatprep.subr.bf16.mxu0 0
        %642 = vmatpush2.bf16.msra.mxu0 0
        %643 = vmatprep.subr.bf16.mxu0 0
        %644 = vmatpush2.bf16.msra.mxu0 0
        %645 = vmatprep.subr.bf16.mxu0 0
        %646 = vmatpush2.bf16.msra.mxu0 0
        %647 = vmatprep.mubr.bf16.mxu0 0
        %648 = vmatmul.mubr.bf16.gmra.mxu0 %v610
        %v649 = vpop.f32.mrf.mxu0
        %v650 = vadd.f32 0.0, %v649
        %v651 = vpop.f32.mrf.mxu0
        %v652 = vpop.f32.mrf.mxu0
        %v653 = vpop.f32.mrf.mxu0
        %654 = vdwg.mxu0
        %656 = vrot.lane.b32.xlu0 %v650, 16
        %v657 = vpop.permute.xlu0 %656
        %vm659 = vcmask 195712
        %660 = vst.msk [vmem:[%s225] sm:$0xff] %vm659, %v657
        %661 = vrot.lane.b32.xlu0 %v299, 104
        %v662 = vpop.permute.xlu0 %661
        %663 = vrot.lane.b32.xlu0 %v305, 72
        %v664 = vpop.permute.xlu0 %663
        %v666 = vsel %vm311, %v662, 0
        %v669 = vsel %vm311, %v664, 0
        %671 = vmatprep.subr.bf16.mxu0 0
        %672 = vmatpush1.bf16.xpose.msra.mxu0 0
        %673 = vmatprep.subr.bf16.mxu0 0
        %674 = vmatpush1.bf16.xpose.msra.mxu0 0
        %675 = vmatprep.subr.bf16.mxu0 0
        %676 = vmatpush1.bf16.xpose.msra.mxu0 0
        %677 = vmatprep.subr.bf16.mxu0 0
        %678 = vmatpush1.bf16.xpose.msra.mxu0 0
        %679 = vmatprep.subr.bf16.mxu0 0
        %680 = vmatpush1.bf16.xpose.msra.mxu0 0
        %681 = vmatprep.subr.bf16.mxu0 0
        %682 = vmatpush1.bf16.xpose.msra.mxu0 0
        %683 = vmatprep.subr.bf16.mxu0 0
        %684 = vmatpush1.bf16.xpose.msra.mxu0 0
        %685 = vmatprep.subr.bf16.mxu0 0
        %686 = vmatpush1.bf16.xpose.msra.mxu0 %v669
        %687 = vmatprep.subr.bf16.mxu0 0
        %688 = vmatpush2.bf16.xpose.msra.mxu0 0
        %689 = vmatprep.subr.bf16.mxu0 0
        %690 = vmatpush2.bf16.xpose.msra.mxu0 0
        %691 = vmatprep.subr.bf16.mxu0 0
        %692 = vmatpush2.bf16.xpose.msra.mxu0 0
        %693 = vmatprep.subr.bf16.mxu0 0
        %694 = vmatpush2.bf16.xpose.msra.mxu0 0
        %695 = vmatprep.subr.bf16.mxu0 0
        %696 = vmatpush2.bf16.xpose.msra.mxu0 0
        %697 = vmatprep.subr.bf16.mxu0 0
        %698 = vmatpush2.bf16.xpose.msra.mxu0 0
        %699 = vmatprep.subr.bf16.mxu0 0
        %700 = vmatpush2.bf16.xpose.msra.mxu0 0
        %701 = vmatprep.subr.bf16.mxu0 0
        %702 = vmatpush2.bf16.xpose.msra.mxu0 0
        %703 = vmatprep.mubr.bf16.mxu0 0
        %704 = vmatmul.mubr.bf16.gmra.mxu0 %v666
        %v705 = vpop.f32.mrf.mxu0
        %v706 = vadd.f32 0.0, %v705
        %v707 = vpop.f32.mrf.mxu0
        %v708 = vpop.f32.mrf.mxu0
        %v709 = vpop.f32.mrf.mxu0
        %710 = vdwg.mxu0
        %v711 = vsel %vm362, %v706, -10000.0
        %v712 = vsel %vm311, %v711, -inf
        %713 = vmax.xlane.f32.xlu0 %v712
        %v714 = vpop.xlane.xlu0 %713
        %v715 = vsub.f32 %v711, %v714
        %v716 = vmul.f32 %v715, 1.442695
        %v717 = vpow.pop %v716
        %v718 = vsel %vm311, %v717, 0.0
        %719 = vadd.xlane.f32.xlu0 %v718
        %v720 = vpop.xlane.xlu0 %719
        %v721 = vrcp.pop %v720
        %v722 = vmul.f32 %v717, %v721
        %v723 = vpack.c.bf16 %v722, %v722
        %724 = vrot.lane.b32.xlu0 %v299, 40
        %v725 = vpop.permute.xlu0 %724
        %v727 = vsel %vm311, %v723, 0
        %v730 = vsel %vm382, %v725, 0
        %732 = vmatprep.subr.bf16.mxu0 0
        %733 = vmatpush1.bf16.msra.mxu0 0
        %734 = vmatprep.subr.bf16.mxu0 0
        %735 = vmatpush1.bf16.msra.mxu0 0
        %736 = vmatprep.subr.bf16.mxu0 0
        %737 = vmatpush1.bf16.msra.mxu0 0
        %738 = vmatprep.subr.bf16.mxu0 0
        %739 = vmatpush1.bf16.msra.mxu0 0
        %740 = vmatprep.subr.bf16.mxu0 0
        %741 = vmatpush1.bf16.msra.mxu0 0
        %742 = vmatprep.subr.bf16.mxu0 0
        %743 = vmatpush1.bf16.msra.mxu0 0
        %744 = vmatprep.subr.bf16.mxu0 0
        %745 = vmatpush1.bf16.msra.mxu0 0
        %746 = vmatprep.subr.bf16.mxu0 0
        %747 = vmatpush1.bf16.msra.mxu0 %v730
        %748 = vmatprep.subr.bf16.mxu0 0
        %749 = vmatpush2.bf16.msra.mxu0 0
        %750 = vmatprep.subr.bf16.mxu0 0
        %751 = vmatpush2.bf16.msra.mxu0 0
        %752 = vmatprep.subr.bf16.mxu0 0
        %753 = vmatpush2.bf16.msra.mxu0 0
        %754 = vmatprep.subr.bf16.mxu0 0
        %755 = vmatpush2.bf16.msra.mxu0 0
        %756 = vmatprep.subr.bf16.mxu0 0
        %757 = vmatpush2.bf16.msra.mxu0 0
        %758 = vmatprep.subr.bf16.mxu0 0
        %759 = vmatpush2.bf16.msra.mxu0 0
        %760 = vmatprep.subr.bf16.mxu0 0
        %761 = vmatpush2.bf16.msra.mxu0 0
        %762 = vmatprep.subr.bf16.mxu0 0
        %763 = vmatpush2.bf16.msra.mxu0 0
        %764 = vmatprep.mubr.bf16.mxu0 0
        %765 = vmatmul.mubr.bf16.gmra.mxu0 %v727
        %v766 = vpop.f32.mrf.mxu0
        %v767 = vadd.f32 0.0, %v766
        %v768 = vpop.f32.mrf.mxu0
        %v769 = vpop.f32.mrf.mxu0
        %v770 = vpop.f32.mrf.mxu0
        %771 = vdwg.mxu0
        %773 = vrot.lane.b32.xlu0 %v767, 24
        %v774 = vpop.permute.xlu0 %773
        %vm776 = vcmask 261312
        %777 = vst.msk [vmem:[%s225] sm:$0xff] %vm776, %v774
        %s778 = sand.u32 %s123, 1
        %s779 = scalar_lea.sflag [#allocation4], %s778
        %s780 = sand.u32 %s123, 1
        %s781 = smul.addr %s780, 8
        %s782 = scalar_lea.vmem [#allocation5], %s781
        // Predicated region
        $region41: #{tpu_custom_call.1} parent=35 // pred_check
          %p783 = pneg %p133
        $region42: #{tpu_custom_call.1} parent=35 // pred_check_branch
          %785 = sbr.rel (%p783) target = $region44
        $region43: #{tpu_custom_call.1} parent=35 // pred_region
          %s787 = ssub.s32 128, 128
          %788 = vsyncadd %s779, %s787
          %s789 = smul.addr %s21, 128
          %s790 = scalar_lea.hbm %s4, %s789
          %s792 = sshll.u32 %s782, 4
          %s793 = int_to_ptr.vmem [resolvable:$true] %s792
          %795 = dma.vmem_to_hbm [thread:$0]  %s793, 128, %s790, %s779
        $region44: #{tpu_custom_call.1} parent=35 // pred_fallthru
          _
      $region36: #{tpu_custom_call.1} parent=5 // pred_fallthru
        _
      %p796 = scmp.le.s32.totalorder 2, %s16
      // Predicated region
      $region45: #{tpu_custom_call.1} parent=5 // pred_check
        %p797 = pneg %p796
      $region46: #{tpu_custom_call.1} parent=5 // pred_check_branch
        %799 = sbr.rel (%p797) target = $region48
      $region47: #{tpu_custom_call.1} parent=5 // pred_region
        %s800 = ssub.s32 %s16, 2
        // Predicated region
        $region49: #{tpu_custom_call.1} parent=47 // pred_check
          %p801 = pneg %p139
        $region50: #{tpu_custom_call.1} parent=47 // pred_check_branch
          %803 = sbr.rel (%p801) target = $region52
        $region51: #{tpu_custom_call.1} parent=47 // pred_region
          %s804 = sand.u32 %s124, 1
          %s805 = scalar_lea.sflag [#allocation4], %s804
          %s806 = sand.u32 %s124, 1
          %s807 = smul.addr %s806, 8
          %s808 = scalar_lea.vmem [#allocation5], %s807
          %809 = dma.done %s805, 128
        $region52: #{tpu_custom_call.1} parent=47 // pred_fallthru
          _
      $region48: #{tpu_custom_call.1} parent=5 // pred_fallthru
        _
    $region6: #{tpu_custom_call.1} parent=1 // loop_footer
      %s20 = sadd.s32 1, %s16
    $region7: #{tpu_custom_call.1} parent=1 // loop_footer_branch
      %15 = sbr.rel target = $region3
    $region8: #{tpu_custom_call.1} parent=1 // loop_exit
      _
    %810 = vsyncpa [#allocation3], 1
    %s811 = scalar_lea.sflag [#allocation3], 1
    %812 = vsyncpa %s811, 1
    %813 = vsyncpa [#allocation4], 1
    %s814 = scalar_lea.sflag [#allocation4], 1
    %815 = vsyncpa %s814, 1

</llo_original>
